<compile_context>
chip_gen: v7x
topology: tpu7x:2x2x1
jax: 0.10.0
libtpu: 0.0.40
codegen_flags: <defaults>
</compile_context>

<pallas_src>
import functools

import jax
import jax.numpy as jnp
from jax.experimental import pallas as pl
from jax.experimental.pallas import tpu as pltpu


def _affine_grid_kernel(theta_ref, o_ref, *, out_h, out_w, tile_h):
    n = pl.program_id(0)          # batch index
    i = pl.program_id(1)          # row-tile index

    # theta flattened to (N*6,) in SMEM: [t00, t01, t02, t10, t11, t12] per n.
    base = n * 6
    t00 = theta_ref[base + 0]
    t01 = theta_ref[base + 1]
    t02 = theta_ref[base + 2]
    t10 = theta_ref[base + 3]
    t11 = theta_ref[base + 4]
    t12 = theta_ref[base + 5]

    shape = o_ref.shape           # (tile_h, 2*out_w)
    lane = jax.lax.broadcasted_iota(jnp.int32, shape, dimension=1)
    row = jax.lax.broadcasted_iota(jnp.int32, shape, dimension=0) + i * tile_h

    w_idx = lane >> 1             # pixel column (x/y pairs interleaved on lanes)
    is_y = (lane & 1) == 1        # even lane -> x component, odd lane -> y

    # align_corners=False pixel-center normalized coordinates.
    x = (2.0 * w_idx.astype(jnp.float32) + 1.0) * (1.0 / out_w) - 1.0
    y = (2.0 * row.astype(jnp.float32) + 1.0) * (1.0 / out_h) - 1.0

    a = jnp.where(is_y, t10, t00)
    b = jnp.where(is_y, t11, t01)
    c = jnp.where(is_y, t12, t02)
    o_ref[...] = a * x + b * y + c


def _pick_tile_h(out_h, out_w):
    """Row tile so one output tile stays ~<=2 MiB f32 (cheap double-buffering)."""
    bytes_per_row = 2 * out_w * 4
    max_rows = max(8, (2 * 1024 * 1024) // bytes_per_row)
    if out_h <= max_rows:
        return out_h                       # full extent: always layout-legal
    return max(8, (max_rows // 8) * 8)     # multiple of 8 (sublane tiling)


def affine_grid(theta, out_h, out_w):
    """Pallas equivalent of F.affine_grid(theta, (N, C, out_h, out_w)).

    theta: (N, 2, 3) float  ->  (N, out_h, out_w, 2) float32.
    """
    N = theta.shape[0]
    theta_flat = theta.reshape(N * 6).astype(jnp.float32)

    tile_h = _pick_tile_h(out_h, out_w)
    grid = (N, pl.cdiv(out_h, tile_h))

    kernel = functools.partial(
        _affine_grid_kernel, out_h=out_h, out_w=out_w, tile_h=tile_h)

    out = pl.pallas_call(
        kernel,
        out_shape=jax.ShapeDtypeStruct((N, out_h, 2 * out_w), jnp.float32),
        grid=grid,
        in_specs=[pl.BlockSpec(memory_space=pltpu.MemorySpace.SMEM)],
        out_specs=pl.BlockSpec((None, tile_h, 2 * out_w),
                               lambda n, i: (n, i, 0)),
        compiler_params=pltpu.CompilerParams(
            dimension_semantics=("parallel", "parallel"),
            vmem_limit_bytes=32 * 1024 * 1024),
    )(theta_flat)

    # Contiguous (free) reshape to the PyTorch output layout (N, H, W, 2).
    return out.reshape(N, out_h, out_w, 2)


class AffineGridGen:
    """Mirrors the PyTorch module's constructor/forward signature."""

    def __init__(self, out_h=256, out_w=192, out_ch=3):
        self.out_h = out_h
        self.out_w = out_w
        self.out_ch = out_ch  # only used for the (unused) channel dim, as in PyTorch

    def __call__(self, theta):
        return affine_grid(theta, self.out_h, self.out_w)


def _affine_grid_ref(theta, out_h, out_w):
    """Pure-JAX reference (align_corners=False), for correctness checking."""
    xs = (2.0 * jnp.arange(out_w, dtype=jnp.float32) + 1.0) / out_w - 1.0
    ys = (2.0 * jnp.arange(out_h, dtype=jnp.float32) + 1.0) / out_h - 1.0
    xg, yg = jnp.meshgrid(xs, ys, indexing="xy")             # (H, W) each
    base = jnp.stack([xg, yg, jnp.ones_like(xg)], axis=-1)   # (H, W, 3)
    return jnp.einsum("hwj,nkj->nhwk", base, theta.astype(jnp.float32))


if __name__ == "__main__":
    key = jax.random.PRNGKey(0)
    batch, out_h, out_w = 2, 32, 24     # small shapes consistent with the module
    theta = jax.random.normal(key, (batch, 2, 3), jnp.float32)

    gen = AffineGridGen(out_h=out_h, out_w=out_w, out_ch=3)
    grid = jax.jit(gen.__call__)(theta)
    grid = jax.block_until_ready(grid)

    ref = _affine_grid_ref(theta, out_h, out_w)
    assert grid.shape == (batch, out_h, out_w, 2)
    assert bool(jnp.all(jnp.isfinite(grid)))
    assert bool(jnp.max(jnp.abs(grid - ref)) < 1e-5)
    print("KERNEL_OK")
</pallas_src>

<mosaic_0001>
module attributes {stable_mosaic.version = 11 : i64} {
  func.func @_affine_grid_kernel(%arg0: i32, %arg1: i32, %arg2: memref<12xf32, #tpu.memory_space<smem>>, %arg3: memref<1x32x48xf32, #tpu.memory_space<vmem>>) attributes {dimension_semantics = [#tpu.dimension_semantics<parallel>, #tpu.dimension_semantics<parallel>], iteration_bounds = array<i64: 2, 1>, scalar_prefetch = 0 : i64, scratch_operands = 0 : i64, tpu.core_type = #tpu.core_type<tc>, window_params = [{transform_indices = @transform_0, window_bounds = array<i64: 12>}, {transform_indices = @transform_1, window_bounds = array<i64: 1, 32, 48>}]} {
    %c6_i32 = arith.constant 6 : i32
    %0 = arith.muli %arg0, %c6_i32 : i32
    %c0_i32 = arith.constant 0 : i32
    %1 = arith.addi %0, %c0_i32 : i32
    %2 = arith.index_cast %1 : i32 to index
    %3 = memref.load %arg2[%2] : memref<12xf32, #tpu.memory_space<smem>>
    %c1_i32 = arith.constant 1 : i32
    %4 = arith.addi %0, %c1_i32 : i32
    %5 = arith.index_cast %4 : i32 to index
    %6 = memref.load %arg2[%5] : memref<12xf32, #tpu.memory_space<smem>>
    %c2_i32 = arith.constant 2 : i32
    %7 = arith.addi %0, %c2_i32 : i32
    %8 = arith.index_cast %7 : i32 to index
    %9 = memref.load %arg2[%8] : memref<12xf32, #tpu.memory_space<smem>>
    %c3_i32 = arith.constant 3 : i32
    %10 = arith.addi %0, %c3_i32 : i32
    %11 = arith.index_cast %10 : i32 to index
    %12 = memref.load %arg2[%11] : memref<12xf32, #tpu.memory_space<smem>>
    %c4_i32 = arith.constant 4 : i32
    %13 = arith.addi %0, %c4_i32 : i32
    %14 = arith.index_cast %13 : i32 to index
    %15 = memref.load %arg2[%14] : memref<12xf32, #tpu.memory_space<smem>>
    %c5_i32 = arith.constant 5 : i32
    %16 = arith.addi %0, %c5_i32 : i32
    %17 = arith.index_cast %16 : i32 to index
    %18 = memref.load %arg2[%17] : memref<12xf32, #tpu.memory_space<smem>>
    %19 = tpu.iota {dimensions = array<i32: 1>} : vector<32x48xi32>
    %20 = tpu.iota {dimensions = array<i32: 0>} : vector<32x48xi32>
    %c32_i32 = arith.constant 32 : i32
    %21 = arith.muli %arg1, %c32_i32 : i32
    %22 = vector.broadcast %21 : i32 to vector<32x48xi32>
    %23 = arith.addi %20, %22 : vector<32x48xi32>
    %c1_i32_0 = arith.constant 1 : i32
    %24 = vector.broadcast %c1_i32_0 : i32 to vector<32x48xi32>
    %25 = arith.shrsi %19, %24 : vector<32x48xi32>
    %c1_i32_1 = arith.constant 1 : i32
    %26 = vector.broadcast %c1_i32_1 : i32 to vector<32x48xi32>
    %27 = arith.andi %19, %26 : vector<32x48xi32>
    %c1_i32_2 = arith.constant 1 : i32
    %28 = vector.broadcast %c1_i32_2 : i32 to vector<32x48xi32>
    %29 = arith.cmpi eq, %27, %28 : vector<32x48xi32>
    %30 = arith.sitofp %25 : vector<32x48xi32> to vector<32x48xf32>
    %cst = arith.constant 2.000000e+00 : f32
    %31 = vector.broadcast %cst : f32 to vector<32x48xf32>
    %32 = arith.mulf %31, %30 : vector<32x48xf32>
    %cst_3 = arith.constant 1.000000e+00 : f32
    %33 = vector.broadcast %cst_3 : f32 to vector<32x48xf32>
    %34 = arith.addf %32, %33 : vector<32x48xf32>
    %cst_4 = arith.constant 0.0416666679 : f32
    %35 = vector.broadcast %cst_4 : f32 to vector<32x48xf32>
    %36 = arith.mulf %34, %35 : vector<32x48xf32>
    %cst_5 = arith.constant 1.000000e+00 : f32
    %37 = vector.broadcast %cst_5 : f32 to vector<32x48xf32>
    %38 = arith.subf %36, %37 : vector<32x48xf32>
    %39 = arith.sitofp %23 : vector<32x48xi32> to vector<32x48xf32>
    %cst_6 = arith.constant 2.000000e+00 : f32
    %40 = vector.broadcast %cst_6 : f32 to vector<32x48xf32>
    %41 = arith.mulf %40, %39 : vector<32x48xf32>
    %cst_7 = arith.constant 1.000000e+00 : f32
    %42 = vector.broadcast %cst_7 : f32 to vector<32x48xf32>
    %43 = arith.addf %41, %42 : vector<32x48xf32>
    %cst_8 = arith.constant 3.125000e-02 : f32
    %44 = vector.broadcast %cst_8 : f32 to vector<32x48xf32>
    %45 = arith.mulf %43, %44 : vector<32x48xf32>
    %cst_9 = arith.constant 1.000000e+00 : f32
    %46 = vector.broadcast %cst_9 : f32 to vector<32x48xf32>
    %47 = arith.subf %45, %46 : vector<32x48xf32>
    %48 = vector.broadcast %12 : f32 to vector<32x48xf32>
    %49 = vector.broadcast %3 : f32 to vector<32x48xf32>
    %50 = arith.select %29, %48, %49 : vector<32x48xi1>, vector<32x48xf32>
    %51 = vector.broadcast %15 : f32 to vector<32x48xf32>
    %52 = vector.broadcast %6 : f32 to vector<32x48xf32>
    %53 = arith.select %29, %51, %52 : vector<32x48xi1>, vector<32x48xf32>
    %54 = vector.broadcast %18 : f32 to vector<32x48xf32>
    %55 = vector.broadcast %9 : f32 to vector<32x48xf32>
    %56 = arith.select %29, %54, %55 : vector<32x48xi1>, vector<32x48xf32>
    %57 = arith.mulf %50, %38 : vector<32x48xf32>
    %58 = arith.mulf %53, %47 : vector<32x48xf32>
    %59 = arith.addf %57, %58 : vector<32x48xf32>
    %60 = arith.addf %59, %56 : vector<32x48xf32>
    %c0 = arith.constant 0 : index
    %c0_10 = arith.constant 0 : index
    %c0_11 = arith.constant 0 : index
    %61 = vector.load %arg3[%c0, %c0_10, %c0_11] : memref<1x32x48xf32, #tpu.memory_space<vmem>>, vector<1x32x48xf32>
    %62 = vector.shape_cast %61 : vector<1x32x48xf32> to vector<32x48xf32>
    %63 = vector.shape_cast %60 : vector<32x48xf32> to vector<1x32x48xf32>
    tpu.vector_store %arg3[%c0, %c0_10, %c0_11], %63 {strides = array<i32>} : memref<1x32x48xf32, #tpu.memory_space<vmem>>, vector<1x32x48xf32>,
    return
  }
  func.func @transform_0(%arg0: i32, %arg1: i32) -> i32 {
    %c0_i32 = arith.constant 0 : i32
    %c0_i32_0 = arith.constant 0 : i32
    return %c0_i32 : i32
  }
  func.func @transform_1(%arg0: i32, %arg1: i32) -> (i32, i32, i32) {
    %c0_i32 = arith.constant 0 : i32
    %c0_i32_0 = arith.constant 0 : i32
    return %arg0, %arg1, %c0_i32 : i32, i32, i32
  }
}

</mosaic_0001>

<llo_original>
// kernel: a_call__.1
$region0: #{a_call__.1}
  #allocation0 [shape = 'u32[]', space=smem, size = 0x4, offset = 0x4, fixed_abs, tag = 'smem constant byte address 0x4 - core index']
  #allocation1 [shape = 'u32[144,128]{1,0:T(1,128)}', space=vmem, size = 0x12000, scoped, tag = 'internal scratch']
  %s0 = inlined_call_operand.vmem [shape: f32[12], index: 0, kind: input, shape index: {}]
  %s1 = inlined_call_operand.vmem [shape: f32[2,32,48], index: 1, kind: output, shape index: {}]
  %s2 = sld [smem:[#allocation0]]
  $region41: #{a_call__.1} parent=0
    _
  %s4 = ssub.s32 1, %s2
  %s5 = scalar_select 0, %s4, %s2
  $region1: #{a_call__.1} parent=0
    #allocation2 [shape = 'u8[512]{0}', space=smem, size = 0x200, scoped, tag = 'input window, operand 0, single buffered']
    #allocation3 [shape = 's32[2]{0}', space=sflag, size = 0x8, scoped, tag = 'scoped memory for a_call__.1']
    %6 = vsyncpa [#allocation3], 0
    loop: start=0, step=1, limit=4
    $region2: #{a_call__.1} parent=1 // loop_pre_header
      _
    $region3: #{a_call__.1} parent=1 // loop_header
      %s8 = sphi 0, %s12
      %p9 = scmp.ge.s32.totalorder %s8, 4
      %s15 = sphi 0, %s27
      %s16 = sphi 0, %s23
      %s17 = sphi 0, %s15
      %s18 = sphi 0, %s16
      %s19 = sphi 0, %s17
      %s20 = sphi 0, %s18
      %s28 = sphi 0, %s28
      %s30 = sphi 0, %s28
      %s31 = sphi 0, %s30
      %s45 = sphi 0, %s31
      %s53 = sphi 0, %s55
      %s56 = sphi 0, %s53
      %s57 = sphi 0, %s56
      %s73 = sphi 0, %s57
    $region4: #{a_call__.1} parent=1 // loop_header_branch
      %11 = sbr.rel (%p9) target = $region8
    $region5: #{a_call__.1} parent=1 // loop_body
      %s13 = ssub.s32 %s8, 1
      %s14 = ssub.s32 %s8, 2
      %s21 = sadd.s32 1, %s16
      %p22 = scmp.ge.s32.totalorder %s21, 1
      %s23 = scalar_select %p22, 0, %s21
      %s24 = sadd.s32 1, %s15
      %s25 = scalar_select %p22, %s24, %s15
      %p26 = scmp.ge.s32.totalorder %s25, 2
      %s27 = scalar_select %p26, 0, %s25
      %s29 = sadd.s32 %s28, 1
      %p32 = scmp.eq.s32.totalorder %s8, 1
      %p33 = scmp.ne.s32.totalorder %s28, %s30
      %p34 = scmp.eq.s32.totalorder %s8, 0
      %p35 = por %p33, %p34
      %p36 = scmp.ne.s32.totalorder %s28, %s30
      %p37 = scmp.eq.s32.totalorder %s13, 1
      %p38 = por %p36, %p37
      %p39 = scmp.ne.s32.totalorder %s30, %s31
      %p40 = scmp.eq.s32.totalorder %s13, 0
      %p41 = por %p39, %p40
      %p42 = scmp.ne.s32.totalorder %s30, %s31
      %p43 = scmp.eq.s32.totalorder %s14, 1
      %p44 = por %p42, %p43
      %p46 = scmp.ne.s32.totalorder %s31, %s45
      %p47 = scmp.eq.s32.totalorder %s14, 0
      %p48 = por %p46, %p47
      %s49 = ssub.s32 %s15, %s27
      %s50 = ssub.s32 %s16, %s23
      %s51 = sor.u32 %s49, %s50
      %p52 = scmp.eq.s32.totalorder %s51, 0
      %s54 = sadd.s32 %s53, 1
      %s55 = scalar_select %p52, %s53, %s54
      %p58 = pneg %p52
      %p59 = scmp.eq.s32.totalorder %s8, 1
      %p60 = por %p58, %p59
      %p61 = scmp.ne.s32.totalorder %s53, %s56
      %p62 = scmp.eq.s32.totalorder %s8, 0
      %p63 = por %p61, %p62
      %p64 = scmp.ne.s32.totalorder %s53, %s56
      %p65 = scmp.eq.s32.totalorder %s13, 1
      %p66 = por %p64, %p65
      %p67 = scmp.ne.s32.totalorder %s56, %s57
      %p68 = scmp.eq.s32.totalorder %s13, 0
      %p69 = por %p67, %p68
      %p70 = scmp.ne.s32.totalorder %s56, %s57
      %p71 = scmp.eq.s32.totalorder %s14, 1
      %p72 = por %p70, %p71
      %p74 = scmp.ne.s32.totalorder %s57, %s73
      %p75 = scmp.eq.s32.totalorder %s14, 0
      %p76 = por %p74, %p75
      %p77 = scmp.le.s32.totalorder 1, %s8
      %p78 = scmp.lt.s32.totalorder %s8, 3
      %p79 = pnand %p77, %p78
      %p80 = pneg %p79
      // Predicated region
      $region9: #{a_call__.1} parent=5 // pred_check
        _
      $region10: #{a_call__.1} parent=5 // pred_check_branch
        %82 = sbr.rel (%p79) target = $region12
      $region11: #{a_call__.1} parent=5 // pred_region
        %s83 = ssub.s32 %s8, 1
        // Predicated region
        $region13: #{a_call__.1} parent=11 // pred_check
          %p84 = pneg %p41
        $region14: #{a_call__.1} parent=11 // pred_check_branch
          %86 = sbr.rel (%p84) target = $region16
        $region15: #{a_call__.1} parent=11 // pred_region
          %s88 = ssub.s32 16, 16
          %89 = vsyncadd [#allocation3], %s88
          %s91 = sshll.u32 %s0, 4
          %s92 = int_to_ptr.vmem [resolvable:$true] %s91
          %94 = dma.vmem_to_smem %s92, 16, [#allocation2], [#allocation3]
        $region16: #{a_call__.1} parent=11 // pred_fallthru
          _
      $region12: #{a_call__.1} parent=5 // pred_fallthru
        _
      %p95 = scmp.lt.s32.totalorder %s8, 2
      // Predicated region
      $region17: #{a_call__.1} parent=5 // pred_check
        %p96 = pneg %p95
      $region18: #{a_call__.1} parent=5 // pred_check_branch
        %98 = sbr.rel (%p96) target = $region20
      $region19: #{a_call__.1} parent=5 // pred_region
        _
      $region20: #{a_call__.1} parent=5 // pred_fallthru
        _
      %p99 = scmp.le.s32.totalorder 1, %s8
      %p100 = scmp.lt.s32.totalorder %s8, 3
      %p101 = pnand %p99, %p100
      %p102 = pneg %p101
      // Predicated region
      $region21: #{a_call__.1} parent=5 // pred_check
        _
      $region22: #{a_call__.1} parent=5 // pred_check_branch
        %104 = sbr.rel (%p101) target = $region24
      $region23: #{a_call__.1} parent=5 // pred_region
        %s105 = ssub.s32 %s8, 1
        // Predicated region
        $region25: #{a_call__.1} parent=23 // pred_check
          %p106 = pneg %p41
        $region26: #{a_call__.1} parent=23 // pred_check_branch
          %108 = sbr.rel (%p106) target = $region28
        $region27: #{a_call__.1} parent=23 // pred_region
          %109 = dma.done [#allocation3], 16
        $region28: #{a_call__.1} parent=23 // pred_fallthru
          _
        %110 = sfence
        %p111 = pneg %p41
        %p112 = pneg %p38
        %p113 = pneg %p69
        %p114 = pneg %p66
        %s115 = smul.u32 4, %s18
        %p116 = scmp.lt.s32.totalorder %s17, 1
        %s117 = scalar_select %p116, %s17, 1
        %p118 = scmp.lt.s32.totalorder %s115, 3
        %s119 = scalar_select %p118, %s115, 3
        %s120 = smul.addr %s117, 4
        %s121 = sadd.s32 %s119, %s120
        %s122 = smul.addr %s121, 8
        %s123 = scalar_lea.vmem %s1, %s122
        %s124 = smul.u32 4, %s18
        %p125 = scmp.lt.s32.totalorder %s17, 1
        %s126 = scalar_select %p125, %s17, 1
        %p127 = scmp.lt.s32.totalorder %s124, 3
        %s128 = scalar_select %p127, %s124, 3
        %s129 = smul.addr %s126, 4
        %s130 = sadd.s32 %s128, %s129
        %s131 = smul.addr %s130, 8
        %s132 = scalar_lea.vmem %s1, %s131
        %s133 = smul.u32 4, %s18
        %s134 = smul.u32 %s17, 6
        %s135 = sld [smem:[#allocation2 + %s134]]
        %s136 = sadd.s32 %s134, 1
        %s137 = sld [smem:[#allocation2 + %s136]]
        %s138 = sadd.s32 %s134, 2
        %s139 = sld [smem:[#allocation2 + %s138]]
        %s140 = sadd.s32 %s134, 3
        %s141 = sld [smem:[#allocation2 + %s140]]
        %s142 = sadd.s32 %s134, 4
        %s143 = sld [smem:[#allocation2 + %s142]]
        %s144 = sadd.s32 %s134, 5
        %s145 = sld [smem:[#allocation2 + %s144]]
        %v146 = vlaneseq
        %v147 = vand.u32 %v146, 127
        %v148 = vlaneseq
        %v149 = vshrl.u32 %v148, 7
        %v150 = vadd.s32 %v149, 8
        %v151 = vadd.s32 %v149, 16
        %v152 = vadd.s32 %v149, 24
        %s153 = smul.u32 %s18, 32
        %v154 = vstv %s153
        %v155 = vadd.s32 %v149, %v154
        %v156 = vadd.s32 %v150, %v154
        %v157 = vadd.s32 %v151, %v154
        %v158 = vadd.s32 %v152, %v154
        %v159 = vshra.s32 %v147, 1
        %v160 = vand.u32 %v147, 1
        %vm161 = vcmp.eq.s32.totalorder %v160, 1
        %v162 = vcvt.s32.f32 %v159
        %v163 = vmul.f32 %v162, 2.0
        %v164 = vadd.f32 %v163, 1.0
        %v165 = vmul.f32 %v164, 0.041666668
        %v166 = vsub.f32 %v165, 1.0
        %v167 = vcvt.s32.f32 %v155
        %v168 = vcvt.s32.f32 %v156
        %v169 = vcvt.s32.f32 %v157
        %v170 = vcvt.s32.f32 %v158
        %v171 = vmul.f32 %v167, 2.0
        %v172 = vmul.f32 %v168, 2.0
        %v173 = vmul.f32 %v169, 2.0
        %v174 = vmul.f32 %v170, 2.0
        %v175 = vadd.f32 %v171, 1.0
        %v176 = vadd.f32 %v172, 1.0
        %v177 = vadd.f32 %v173, 1.0
        %v178 = vadd.f32 %v174, 1.0
        %v179 = vmul.f32 %v175, 0.03125
        %v180 = vmul.f32 %v176, 0.03125
        %v181 = vmul.f32 %v177, 0.03125
        %v182 = vmul.f32 %v178, 0.03125
        %v183 = vsub.f32 %v179, 1.0
        %v184 = vsub.f32 %v180, 1.0
        %v185 = vsub.f32 %v181, 1.0
        %v186 = vsub.f32 %v182, 1.0
        %v187 = vstv %s141
        %v188 = vstv %s135
        %v189 = vsel %vm161, %v187, %v188
        %v190 = vstv %s143
        %v191 = vstv %s137
        %v192 = vsel %vm161, %v190, %v191
        %v193 = vstv %s145
        %v194 = vstv %s139
        %v195 = vsel %vm161, %v193, %v194
        %v196 = vmul.f32 %v189, %v166
        %v197 = vmul.f32 %v192, %v183
        %v198 = vmul.f32 %v192, %v184
        %v199 = vmul.f32 %v192, %v185
        %v200 = vmul.f32 %v192, %v186
        %v201 = vadd.f32 %v196, %v197
        %v202 = vadd.f32 %v196, %v198
        %v203 = vadd.f32 %v196, %v199
        %v204 = vadd.f32 %v196, %v200
        %v205 = vadd.f32 %v201, %v195
        %v206 = vadd.f32 %v202, %v195
        %v207 = vadd.f32 %v203, %v195
        %v208 = vadd.f32 %v204, %v195
        %vm209 = vcmask 392192
        %210 = vst.msk [vmem:[%s132] sm:$0xff] %vm209, %v205
        %211 = vst.msk [vmem:[%s132 + $0x8] sm:$0xff] %vm209, %v206
        %212 = vst.msk [vmem:[%s132 + $0x10] sm:$0xff] %vm209, %v207
        %213 = vst.msk [vmem:[%s132 + $0x18] sm:$0xff] %vm209, %v208
        %s214 = smul.u32 4, %s18
        %p215 = scmp.lt.s32.totalorder %s17, 1
        %s216 = scalar_select %p215, %s17, 1
        %p217 = scmp.lt.s32.totalorder %s214, 3
        %s218 = scalar_select %p217, %s214, 3
        %s219 = smul.addr %s216, 4
        %s220 = sadd.s32 %s218, %s219
        %s221 = smul.addr %s220, 8
        %s222 = scalar_lea.vmem %s1, %s221
        // Predicated region
        $region29: #{a_call__.1} parent=23 // pred_check
          %p223 = pneg %p66
        $region30: #{a_call__.1} parent=23 // pred_check_branch
          %225 = sbr.rel (%p223) target = $region32
        $region31: #{a_call__.1} parent=23 // pred_region
          %s226 = smul.u32 4, %s18
        $region32: #{a_call__.1} parent=23 // pred_fallthru
          _
      $region24: #{a_call__.1} parent=5 // pred_fallthru
        _
      %p227 = scmp.le.s32.totalorder 2, %s8
      // Predicated region
      $region33: #{a_call__.1} parent=5 // pred_check
        %p228 = pneg %p227
      $region34: #{a_call__.1} parent=5 // pred_check_branch
        %230 = sbr.rel (%p228) target = $region36
      $region35: #{a_call__.1} parent=5 // pred_region
        %s231 = ssub.s32 %s8, 2
        // Predicated region
        $region37: #{a_call__.1} parent=35 // pred_check
          %p232 = pneg %p72
        $region38: #{a_call__.1} parent=35 // pred_check_branch
          %234 = sbr.rel (%p232) target = $region40
        $region39: #{a_call__.1} parent=35 // pred_region
          %s235 = smul.u32 4, %s20
          %p236 = scmp.lt.s32.totalorder %s19, 1
          %s237 = scalar_select %p236, %s19, 1
          %p238 = scmp.lt.s32.totalorder %s235, 3
          %s239 = scalar_select %p238, %s235, 3
          %s240 = smul.addr %s237, 4
          %s241 = sadd.s32 %s239, %s240
          %s242 = smul.addr %s241, 8
          %s243 = scalar_lea.vmem %s1, %s242
        $region40: #{a_call__.1} parent=35 // pred_fallthru
          _
      $region36: #{a_call__.1} parent=5 // pred_fallthru
        _
    $region6: #{a_call__.1} parent=1 // loop_footer
      %s12 = sadd.s32 1, %s8
    $region7: #{a_call__.1} parent=1 // loop_footer_branch
      %7 = sbr.rel target = $region3
    $region8: #{a_call__.1} parent=1 // loop_exit
      _
    %244 = vsyncpa [#allocation3], 1
    %s245 = scalar_lea.sflag [#allocation3], 1
    %246 = vsyncpa %s245, 1

</llo_original>
